<compile_context>
chip_gen: v7x
topology: tpu7x:2x2x1
jax: 0.10.0
libtpu: 0.0.40
codegen_flags: <defaults>
</compile_context>

<pallas_src>
import functools

import jax
import jax.numpy as jnp
from jax import lax
from jax.experimental import pallas as pl
from jax.experimental.pallas import tpu as pltpu


# ---------------------------------------------------------------------------
# small helpers
# ---------------------------------------------------------------------------

def _round_up(n, m):
    return ((n + m - 1) // m) * m


@functools.lru_cache(maxsize=None)
def _vmem_budget_bytes():
    """Usable VMEM budget for this generation (capacity minus Mosaic headroom)."""
    cap = None
    try:
        cap = int(pltpu.get_tpu_info().vmem_capacity_bytes)
    except Exception:  # no TPU info available at trace time -> conservative
        cap = None
    if not cap or cap <= 0:
        cap = 64 * 1024 * 1024            # v7x-sized conservative fallback
    # Leave ~8 MiB headroom for Mosaic internal scratch / semaphores.
    # -> ~120 MiB on v5e/v6e (128 MiB), ~56 MiB on v7x (64 MiB).
    return max(cap - 8 * 1024 * 1024, 16 * 1024 * 1024)


def _layer_norm(y, gamma, beta, *, d_valid, n_pad, eps):
    """LayerNorm over the REAL d_in features of y (padded columns are zero)."""
    inv_d = 1.0 / d_valid
    mean = jnp.sum(y, axis=-1, keepdims=True) * inv_d
    if n_pad == 0:
        # No padded columns -> numerically stable two-pass variance.
        c = y - mean
        var = jnp.sum(c * c, axis=-1, keepdims=True) * inv_d
        norm = c * lax.rsqrt(var + eps)
    else:
        # Fused single pass: padded columns of y are exactly zero so sum(y) and
        # sum(y*y) only see real features.  Slightly less stable than the
        # two-pass form; fine at bf16-class tolerance.
        s2 = jnp.sum(y * y, axis=-1, keepdims=True)
        var = jnp.maximum(s2 * inv_d - mean * mean, 0.0)
        norm = (y - mean) * lax.rsqrt(var + eps)
    return norm * gamma + beta


def _cost_estimate(B_p, d_in_p, d_hid_p, x_item, w_item, weight_passes):
    flops = 2 * B_p * d_in_p * d_hid_p * 2 + 10 * B_p * d_in_p
    bytes_accessed = (2 * B_p * d_in_p * x_item
                      + weight_passes * 2 * d_in_p * d_hid_p * w_item
                      + (2 * d_hid_p + 6 * d_in_p) * 4)
    return pl.CostEstimate(flops=int(flops), transcendentals=int(B_p),
                           bytes_accessed=int(bytes_accessed))


def _choose_tb(requested, B_p, tb_max, row_align):
    """Pick the row-tile size from the true VMEM footprint and MXU shape."""
    tb = 512 if requested is None else requested          # 512 keeps v6e busy
    tb = min(tb, max(int(tb_max), row_align), _round_up(B_p, row_align))
    tb = max(row_align, (tb // row_align) * row_align)
    if tb >= 256:
        tb = (tb // 256) * 256         # keep the 256-wide MXU M dim full (v6e/v7x)
    n_tiles = -(-B_p // tb)
    if n_tiles > 1:
        # Balance row tiles across the grid (keeps both v7x TensorCores busy and
        # avoids a tiny ragged last tile); never shrink below 256 unless we were
        # already below 256.
        bal = _round_up(-(-B_p // n_tiles), row_align)
        if bal >= 256 or tb < 256:
            tb = bal
        n_tiles = -(-B_p // tb)
    return tb, n_tiles


# ---------------------------------------------------------------------------
# kernels
# ---------------------------------------------------------------------------

def _hard_fc_fused_kernel(x_ref, w1_ref, b1_ref, w2_ref, b2_ref, g_ref, beta_ref,
                          o_ref, *, d_valid, n_pad, eps, matmul_dtype):
    """Both weight matrices resident in VMEM; one row-tile per grid step."""
    x_raw = x_ref[...]
    xf = x_raw.astype(jnp.float32)

    # w_1: Linear(d_in -> d_hid) + ReLU  (MXU, bf16 operands, f32 accumulate)
    h = jnp.dot(x_raw.astype(matmul_dtype), w1_ref[...],
                preferred_element_type=jnp.float32)
    h = jnp.maximum(h + b1_ref[...], 0.0)

    # w_2: Linear(d_hid -> d_in); Dropout(p=0) == identity; residual add in f32.
    y = jnp.dot(h.astype(matmul_dtype), w2_ref[...],
                preferred_element_type=jnp.float32)
    y = y + b2_ref[...] + xf

    o_ref[...] = _layer_norm(y, g_ref[...], beta_ref[...], d_valid=d_valid,
                             n_pad=n_pad, eps=eps).astype(o_ref.dtype)


def _hard_fc_ktiled_kernel(x_ref, w1_ref, b1_ref, w2_ref, b2_ref, g_ref, beta_ref,
                           o_ref, acc_ref, *, d_valid, n_pad, eps, matmul_dtype):
    """Hidden dim streamed in K tiles; second GEMM accumulated in f32 scratch."""
    k = pl.program_id(1)

    @pl.when(k == 0)
    def _init():
        acc_ref[...] = jnp.zeros_like(acc_ref)

    x_raw = x_ref[...]

    h = jnp.dot(x_raw.astype(matmul_dtype), w1_ref[...],
                preferred_element_type=jnp.float32)
    h = jnp.maximum(h + b1_ref[...], 0.0)
    acc_ref[...] += jnp.dot(h.astype(matmul_dtype), w2_ref[...],
                            preferred_element_type=jnp.float32)

    @pl.when(k == pl.num_programs(1) - 1)
    def _epilogue():
        y = acc_ref[...] + b2_ref[...] + x_raw.astype(jnp.float32)
        o_ref[...] = _layer_norm(y, g_ref[...], beta_ref[...], d_valid=d_valid,
                                 n_pad=n_pad, eps=eps).astype(o_ref.dtype)


# ---------------------------------------------------------------------------
# parameter prep (done ONCE, outside the per-call hot path)
# ---------------------------------------------------------------------------

def prepare_hard_fc_params(w1, b1, w2, b2, gamma, beta, *,
                           matmul_dtype=jnp.bfloat16):
    """Pad to lane-dense multiples of 128 (only if needed) and cast once."""
    d_in, d_hid = w1.shape
    assert w2.shape == (d_hid, d_in)
    d_in_p = _round_up(d_in, 128)
    d_hid_p = _round_up(d_hid, 128)

    def pad2(a, rows, cols, dtype):
        a = jnp.asarray(a, dtype)
        if a.shape != (rows, cols):
            a = jnp.pad(a, ((0, rows - a.shape[0]), (0, cols - a.shape[1])))
        return a

    return {
        "w1": pad2(w1, d_in_p, d_hid_p, matmul_dtype),
        "b1": pad2(jnp.reshape(b1, (1, -1)), 1, d_hid_p, jnp.float32),
        "w2": pad2(w2, d_hid_p, d_in_p, matmul_dtype),
        "b2": pad2(jnp.reshape(b2, (1, -1)), 1, d_in_p, jnp.float32),
        "gamma": pad2(jnp.reshape(gamma, (1, -1)), 1, d_in_p, jnp.float32),
        "beta": pad2(jnp.reshape(beta, (1, -1)), 1, d_in_p, jnp.float32),
        "d_in": int(d_in),
        "d_hid": int(d_hid),
        "matmul_dtype": jnp.dtype(matmul_dtype),
    }


# ---------------------------------------------------------------------------
# forward
# ---------------------------------------------------------------------------

def hard_fc_forward(x, params, *, tb=None, tk=None, force_path=None, eps=1e-6):
    """x: [B, d_in] (f32 or bf16); params: output of prepare_hard_fc_params."""
    d_in = params["d_in"]
    matmul_dtype = params["matmul_dtype"]
    w1, b1, w2 = params["w1"], params["b1"], params["w2"]
    b2, g, beta = params["b2"], params["gamma"], params["beta"]
    d_in_p, d_hid_p = w1.shape

    B = x.shape[0]
    assert x.shape[1] == d_in

    x_item = x.dtype.itemsize
    w_item = matmul_dtype.itemsize
    # Sub-32-bit activations need 16-row sublane tiles (f32: 8).
    row_align = 8 if x_item >= 4 else 16

    # Pad rows only to the sublane multiple and features to 128 (skip if aligned).
    B_p = _round_up(B, row_align)
    x_p = x
    if (B_p, d_in_p) != x.shape:
        x_p = jnp.pad(x, ((0, B_p - B), (0, d_in_p - d_in)))

    budget = _vmem_budget_bytes()
    n_pad = d_in_p - d_in

    # ---- true VMEM footprint accounting -----------------------------------
    # Small resident params (1 buffer each, sublane-padded to 8 rows).
    param_bytes = 4 * 8 * (d_hid_p + 3 * d_in_p)
    # Resident weights (single-buffered via pl.Buffered(1)).
    resident_w_bytes = 2 * d_in_p * d_hid_p * w_item
    # Per tile row: x + out double-buffered, h (f32) + its bf16 cast,
    # x_f32 / y / norm temporaries.
    per_row_fused = (4 * d_in_p * x_item + d_hid_p * (4 + w_item) + 4 * d_in_p * 4)
    fused_fits = (resident_w_bytes + param_bytes
                  + per_row_fused * row_align) <= budget

    if force_path is None:
        path = "fused" if fused_fits else "ktiled"
    else:
        path = force_path

    kernel_kwargs = dict(d_valid=float(d_in), n_pad=n_pad, eps=eps,
                         matmul_dtype=matmul_dtype)

    def _resident_spec(shape, index_map, single_buffer):
        if single_buffer:
            return pl.BlockSpec(shape, index_map, pipeline_mode=pl.Buffered(1))
        return pl.BlockSpec(shape, index_map)

    # ------------------------------------------------------------------ fused
    if path == "fused":
        tb_max = max((budget - resident_w_bytes - param_bytes) // per_row_fused,
                     row_align)
        tb_sel, n_tiles = _choose_tb(tb, B_p, tb_max, row_align)
        kernel = functools.partial(_hard_fc_fused_kernel, **kernel_kwargs)
        cost = _cost_estimate(B_p, d_in_p, d_hid_p, x_item, w_item, 1)

        if n_tiles == 1:
            # Single-tile fast path: no grid / pipeline machinery; everything
            # resident in VMEM (the right shape for tiny / demo sizes).
            out_p = pl.pallas_call(
                kernel,
                out_shape=jax.ShapeDtypeStruct((B_p, d_in_p), x.dtype),
                in_specs=[pl.BlockSpec(memory_space=pltpu.MemorySpace.VMEM)] * 7,
                out_specs=pl.BlockSpec(memory_space=pltpu.MemorySpace.VMEM),
                compiler_params=pltpu.CompilerParams(vmem_limit_bytes=budget),
                cost_estimate=cost,
            )(x_p, w1, b1, w2, b2, g, beta)
            return out_p[:B, :d_in]

        def run(single_buffer_resident):
            res = lambda shape: _resident_spec(shape, lambda i: (0, 0),
                                               single_buffer_resident)
            return pl.pallas_call(
                kernel,
                out_shape=jax.ShapeDtypeStruct((B_p, d_in_p), x.dtype),
                grid_spec=pltpu.PrefetchScalarGridSpec(
                    num_scalar_prefetch=0,
                    grid=(n_tiles,),
                    in_specs=[
                        pl.BlockSpec((tb_sel, d_in_p), lambda i: (i, 0)),  # x (pipelined)
                        res((d_in_p, d_hid_p)),                            # w1 (resident)
                        res((1, d_hid_p)),                                 # b1
                        res((d_hid_p, d_in_p)),                            # w2 (resident)
                        res((1, d_in_p)),                                  # b2
                        res((1, d_in_p)),                                  # gamma
                        res((1, d_in_p)),                                  # beta
                    ],
                    out_specs=pl.BlockSpec((tb_sel, d_in_p), lambda i: (i, 0)),
                ),
                compiler_params=pltpu.CompilerParams(
                    dimension_semantics=("parallel",),
                    vmem_limit_bytes=budget),
                cost_estimate=cost,
            )(x_p, w1, b1, w2, b2, g, beta)

        try:
            out_p = run(True)
        except Exception:
            # Fallback for jax versions without single-buffered pipeline_mode.
            out_p = run(False)
        return out_p[:B, :d_in]

    # ----------------------------------------------------------------- ktiled
    # Weights too large to hold resident (v7x-scale d_hid) or forced: stream
    # (d_in_p, tk) of w1 and (tk, d_in_p) of w2, accumulate the second GEMM in
    # an f32 scratch, epilogue on the last K step.
    tk_sel = min(d_hid_p, 512) if tk is None else tk
    tk_sel = max(128, min(_round_up(tk_sel, 128), d_hid_p))
    n_k = -(-d_hid_p // tk_sel)

    stream_w_bytes = 2 * (2 * d_in_p * tk_sel) * w_item + 2 * 4 * 8 * tk_sel
    per_row_k = (4 * d_in_p * x_item + d_in_p * 4      # x/out (2x) + f32 acc
                 + tk_sel * (4 + w_item)               # h + bf16 cast
                 + 4 * d_in_p * 4)                     # x_f32 / y / norm temps
    tb_max = max((budget - stream_w_bytes - param_bytes) // per_row_k, row_align)
    tb_sel, n_tiles = _choose_tb(tb, B_p, tb_max, row_align)

    kernel = functools.partial(_hard_fc_ktiled_kernel, **kernel_kwargs)
    cost = _cost_estimate(B_p, d_in_p, d_hid_p, x_item, w_item, n_tiles)

    def run(single_buffer_resident):
        res = lambda shape: _resident_spec(shape, lambda i, k: (0, 0),
                                           single_buffer_resident)
        return pl.pallas_call(
            kernel,
            out_shape=jax.ShapeDtypeStruct((B_p, d_in_p), x.dtype),
            grid_spec=pltpu.PrefetchScalarGridSpec(
                num_scalar_prefetch=0,
                grid=(n_tiles, n_k),
                in_specs=[
                    pl.BlockSpec((tb_sel, d_in_p), lambda i, k: (i, 0)),   # x
                    pl.BlockSpec((d_in_p, tk_sel), lambda i, k: (0, k)),   # w1 slab
                    pl.BlockSpec((1, tk_sel), lambda i, k: (0, k)),        # b1 slab
                    pl.BlockSpec((tk_sel, d_in_p), lambda i, k: (k, 0)),   # w2 slab
                    res((1, d_in_p)),                                      # b2
                    res((1, d_in_p)),                                      # gamma
                    res((1, d_in_p)),                                      # beta
                ],
                out_specs=pl.BlockSpec((tb_sel, d_in_p), lambda i, k: (i, 0)),
                scratch_shapes=[pltpu.VMEM((tb_sel, d_in_p), jnp.float32)],
            ),
            compiler_params=pltpu.CompilerParams(
                dimension_semantics=("parallel", "arbitrary"),
                vmem_limit_bytes=budget),
            cost_estimate=cost,
        )(x_p, w1, b1, w2, b2, g, beta)

    try:
        out_p = run(True)
    except Exception:
        out_p = run(False)
    return out_p[:B, :d_in]


# ---------------------------------------------------------------------------
# pure-JAX reference (same matmul operand precision as the kernel)
# ---------------------------------------------------------------------------

def hard_fc_reference(x, w1, b1, w2, b2, gamma, beta, *,
                      matmul_dtype=jnp.bfloat16, eps=1e-6):
    xf = x.astype(jnp.float32)
    h = jnp.dot(xf.astype(matmul_dtype), w1.astype(matmul_dtype),
                preferred_element_type=jnp.float32) + jnp.reshape(b1, (1, -1))
    h = jnp.maximum(h, 0.0)
    y = jnp.dot(h.astype(matmul_dtype), w2.astype(matmul_dtype),
                preferred_element_type=jnp.float32) + jnp.reshape(b2, (1, -1)) + xf
    mean = jnp.mean(y, axis=-1, keepdims=True)
    var = jnp.mean((y - mean) ** 2, axis=-1, keepdims=True)
    out = (y - mean) * lax.rsqrt(var + eps) * jnp.reshape(gamma, (1, -1)) \
        + jnp.reshape(beta, (1, -1))
    return out.astype(x.dtype)


# ---------------------------------------------------------------------------
# demo / self-test
# ---------------------------------------------------------------------------

if __name__ == "__main__":
    def make_raw_params(key, d_in, d_hid):
        k1, k2, k3, k4 = jax.random.split(key, 4)
        bound1 = 1.0 / (d_in ** 0.5)
        bound2 = 1.0 / (d_hid ** 0.5)
        w1 = jax.random.uniform(k1, (d_in, d_hid), jnp.float32, -bound1, bound1)
        b1 = jax.random.uniform(k2, (d_hid,), jnp.float32, -bound1, bound1)
        w2 = jax.random.uniform(k3, (d_hid, d_in), jnp.float32, -bound2, bound2)
        b2 = jax.random.uniform(k4, (d_in,), jnp.float32, -bound2, bound2)
        gamma = jnp.ones((d_in,), jnp.float32)   # LayerNorm weight init
        beta = jnp.zeros((d_in,), jnp.float32)   # LayerNorm bias init
        return w1, b1, w2, b2, gamma, beta

    key = jax.random.PRNGKey(0)
    k1, k2, k3 = jax.random.split(key, 3)

    # Case 1: module-default tiny shapes (B=16, d_in=32, d_hid=64), f32 I/O.
    # Exercises the un-gridded single-tile fast path + padded-feature LayerNorm.
    kx, kp = jax.random.split(k1)
    x1 = jax.random.normal(kx, (16, 32), jnp.float32)
    raw1 = make_raw_params(kp, 32, 64)
    params1 = prepare_hard_fc_params(*raw1)
    out1 = jax.block_until_ready(hard_fc_forward(x1, params1))
    ref1 = hard_fc_reference(x1, *raw1)
    assert out1.shape == x1.shape and out1.dtype == x1.dtype
    assert float(jnp.max(jnp.abs(out1 - ref1))) < 5e-3

    # Case 2: bf16 activation I/O, multi-tile row grid with a ragged last tile.
    # Exercises the pipelined fused path with Buffered(1) resident weights.
    kx, kp = jax.random.split(k2)
    x2 = jax.random.normal(kx, (200, 128), jnp.float32).astype(jnp.bfloat16)
    raw2 = make_raw_params(kp, 128, 256)
    params2 = prepare_hard_fc_params(*raw2)
    out2 = jax.block_until_ready(hard_fc_forward(x2, params2, tb=64))
    ref2 = hard_fc_reference(x2, *raw2)
    assert out2.shape == x2.shape and out2.dtype == x2.dtype
    assert float(jnp.max(jnp.abs(out2.astype(jnp.float32)
                                 - ref2.astype(jnp.float32)))) < 4e-2

    # Case 3: forced hidden-dim (K) tiling path (streamed weights + f32 acc).
    kx, kp = jax.random.split(k3)
    x3 = jax.random.normal(kx, (128, 128), jnp.float32)
    raw3 = make_raw_params(kp, 128, 512)
    params3 = prepare_hard_fc_params(*raw3)
    out3 = jax.block_until_ready(
        hard_fc_forward(x3, params3, tb=64, tk=128, force_path="ktiled"))
    ref3 = hard_fc_reference(x3, *raw3)
    assert out3.shape == x3.shape
    assert float(jnp.max(jnp.abs(out3 - ref3))) < 5e-3

    print("KERNEL_OK")
</pallas_src>

<mosaic_0001>
module attributes {stable_mosaic.version = 11 : i64} {
  func.func @_hard_fc_fused_kernel(%arg0: memref<16x128xf32, #tpu.memory_space<vmem>>, %arg1: memref<128x128xbf16, #tpu.memory_space<vmem>>, %arg2: memref<1x128xf32, #tpu.memory_space<vmem>>, %arg3: memref<128x128xbf16, #tpu.memory_space<vmem>>, %arg4: memref<1x128xf32, #tpu.memory_space<vmem>>, %arg5: memref<1x128xf32, #tpu.memory_space<vmem>>, %arg6: memref<1x128xf32, #tpu.memory_space<vmem>>, %arg7: memref<16x128xf32, #tpu.memory_space<vmem>>) attributes {dimension_semantics = [], scalar_prefetch = 0 : i64, scratch_operands = 0 : i64, tpu.core_type = #tpu.core_type<tc>} {
    %c0 = arith.constant 0 : index
    %c0_0 = arith.constant 0 : index
    %0 = vector.load %arg0[%c0, %c0_0] : memref<16x128xf32, #tpu.memory_space<vmem>>, vector<16x128xf32>
    %1 = arith.truncf %0 : vector<16x128xf32> to vector<16x128xbf16>
    %c0_1 = arith.constant 0 : index
    %c0_2 = arith.constant 0 : index
    %2 = vector.load %arg1[%c0_1, %c0_2] : memref<128x128xbf16, #tpu.memory_space<vmem>>, vector<128x128xbf16>
    %cst = arith.constant dense<0.000000e+00> : vector<16x128xf32>
    %3 = tpu.matmul %1, %2, %cst {dimension_numbers = #tpu.dot_dimension_numbers<[1], [0], [0], [1], [0, 0, 1, 1], [], []>} : vector<16x128xbf16>, vector<128x128xbf16>, vector<16x128xf32> -> vector<16x128xf32>
    %c0_3 = arith.constant 0 : index
    %c0_4 = arith.constant 0 : index
    %4 = vector.load %arg2[%c0_3, %c0_4] : memref<1x128xf32, #tpu.memory_space<vmem>>, vector<1x128xf32>
    %5 = vector.broadcast %4 : vector<1x128xf32> to vector<16x128xf32>
    %6 = arith.addf %3, %5 : vector<16x128xf32>
    %cst_5 = arith.constant 0.000000e+00 : f32
    %7 = vector.broadcast %cst_5 : f32 to vector<16x128xf32>
    %8 = arith.maximumf %6, %7 : vector<16x128xf32>
    %9 = arith.truncf %8 : vector<16x128xf32> to vector<16x128xbf16>
    %c0_6 = arith.constant 0 : index
    %c0_7 = arith.constant 0 : index
    %10 = vector.load %arg3[%c0_6, %c0_7] : memref<128x128xbf16, #tpu.memory_space<vmem>>, vector<128x128xbf16>
    %cst_8 = arith.constant dense<0.000000e+00> : vector<16x128xf32>
    %11 = tpu.matmul %9, %10, %cst_8 {dimension_numbers = #tpu.dot_dimension_numbers<[1], [0], [0], [1], [0, 0, 1, 1], [], []>} : vector<16x128xbf16>, vector<128x128xbf16>, vector<16x128xf32> -> vector<16x128xf32>
    %c0_9 = arith.constant 0 : index
    %c0_10 = arith.constant 0 : index
    %12 = vector.load %arg4[%c0_9, %c0_10] : memref<1x128xf32, #tpu.memory_space<vmem>>, vector<1x128xf32>
    %13 = vector.broadcast %12 : vector<1x128xf32> to vector<16x128xf32>
    %14 = arith.addf %11, %13 : vector<16x128xf32>
    %15 = arith.addf %14, %0 : vector<16x128xf32>
    %c0_11 = arith.constant 0 : index
    %c0_12 = arith.constant 0 : index
    %16 = vector.load %arg5[%c0_11, %c0_12] : memref<1x128xf32, #tpu.memory_space<vmem>>, vector<1x128xf32>
    %c0_13 = arith.constant 0 : index
    %c0_14 = arith.constant 0 : index
    %17 = vector.load %arg6[%c0_13, %c0_14] : memref<1x128xf32, #tpu.memory_space<vmem>>, vector<1x128xf32>
    %cst_15 = arith.constant dense<0.000000e+00> : vector<16xf32>
    %18 = vector.multi_reduction <add>, %15, %cst_15 [1] : vector<16x128xf32> to vector<16xf32>
    %19 = vector.shape_cast %18 : vector<16xf32> to vector<16x1xf32>
    %cst_16 = arith.constant 3.125000e-02 : f32
    %20 = vector.broadcast %cst_16 : f32 to vector<16x1xf32>
    %21 = arith.mulf %19, %20 : vector<16x1xf32>
    %22 = arith.mulf %15, %15 : vector<16x128xf32>
    %cst_17 = arith.constant dense<0.000000e+00> : vector<16xf32>
    %23 = vector.multi_reduction <add>, %22, %cst_17 [1] : vector<16x128xf32> to vector<16xf32>
    %24 = vector.shape_cast %23 : vector<16xf32> to vector<16x1xf32>
    %cst_18 = arith.constant 3.125000e-02 : f32
    %25 = vector.broadcast %cst_18 : f32 to vector<16x1xf32>
    %26 = arith.mulf %24, %25 : vector<16x1xf32>
    %27 = arith.mulf %21, %21 : vector<16x1xf32>
    %28 = arith.subf %26, %27 : vector<16x1xf32>
    %cst_19 = arith.constant 0.000000e+00 : f32
    %29 = vector.broadcast %cst_19 : f32 to vector<16x1xf32>
    %30 = arith.maximumf %28, %29 : vector<16x1xf32>
    %31 = vector.broadcast %21 : vector<16x1xf32> to vector<16x128xf32>
    %32 = arith.subf %15, %31 : vector<16x128xf32>
    %cst_20 = arith.constant 9.99999997E-7 : f32
    %33 = vector.broadcast %cst_20 : f32 to vector<16x1xf32>
    %34 = arith.addf %30, %33 : vector<16x1xf32>
    %35 = math.rsqrt %34 : vector<16x1xf32>
    %36 = vector.broadcast %35 : vector<16x1xf32> to vector<16x128xf32>
    %37 = arith.mulf %32, %36 : vector<16x128xf32>
    %38 = vector.broadcast %16 : vector<1x128xf32> to vector<16x128xf32>
    %39 = arith.mulf %37, %38 : vector<16x128xf32>
    %40 = vector.broadcast %17 : vector<1x128xf32> to vector<16x128xf32>
    %41 = arith.addf %39, %40 : vector<16x128xf32>
    %c0_21 = arith.constant 0 : index
    %c0_22 = arith.constant 0 : index
    %42 = vector.load %arg7[%c0_21, %c0_22] : memref<16x128xf32, #tpu.memory_space<vmem>>, vector<16x128xf32>
    tpu.vector_store %arg7[%c0_21, %c0_22], %41 {strides = array<i32>} : memref<16x128xf32, #tpu.memory_space<vmem>>, vector<16x128xf32>,
    return
  }
}

</mosaic_0001>

<llo_original>
// kernel: tpu_custom_call.1
$region0: #{tpu_custom_call.1}
  #allocation0 [shape = 'u32[]', space=smem, size = 0x4, offset = 0x4, fixed_abs, tag = 'smem constant byte address 0x4 - core index']
  #allocation1 [shape = 'u32[144,128]{1,0:T(1,128)}', space=vmem, size = 0x12000, scoped, tag = 'internal scratch']
  %s0 = inlined_call_operand.hbm [shape: f32[16,128], index: 0, kind: input, shape index: {}]
  %s1 = inlined_call_operand.hbm [shape: bf16[128,128], index: 1, kind: input, shape index: {}]
  %s2 = inlined_call_operand.vmem [shape: f32[1,128], index: 2, kind: input, shape index: {}]
  %s3 = inlined_call_operand.hbm [shape: bf16[128,128], index: 3, kind: input, shape index: {}]
  %s4 = inlined_call_operand.vmem [shape: f32[1,128], index: 4, kind: input, shape index: {}]
  %s5 = inlined_call_operand.vmem [shape: f32[1,128], index: 5, kind: input, shape index: {}]
  %s6 = inlined_call_operand.vmem [shape: f32[1,128], index: 6, kind: input, shape index: {}]
  %s7 = inlined_call_operand.hbm [shape: f32[16,128], index: 7, kind: output, shape index: {}]
  %s8 = sld [smem:[#allocation0]]
  $region50: #{tpu_custom_call.1} parent=0
    _
  %s10 = ssub.s32 1, %s8
  %s11 = scalar_select 0, %s10, %s8
  $region1: #{tpu_custom_call.1} parent=0
    #allocation2 [shape = 'u8[8192]{0}', space=vmem, size = 0x2000, scoped, tag = 'input window, operand 0, single buffered']
    #allocation3 [shape = 's32[1]{0}', space=sflag, size = 0x4, scoped, tag = 'scoped memory for tpu_custom_call.1']
    #allocation4 [shape = 's32[1]{0}', space=sflag, size = 0x4, scoped, tag = 'scoped memory for tpu_custom_call.1']
    #allocation5 [shape = 'u8[32768]{0}', space=vmem, size = 0x8000, scoped, tag = 'input window, operand 1, single buffered']
    #allocation6 [shape = 's32[1]{0}', space=sflag, size = 0x4, scoped, tag = 'scoped memory for tpu_custom_call.1']
    #allocation7 [shape = 'u8[32768]{0}', space=vmem, size = 0x8000, scoped, tag = 'input window, operand 3, single buffered']
    #allocation8 [shape = 'u8[8192]{0}', space=vmem, size = 0x2000, scoped, tag = 'output window, operand 0, single buffered']
    %12 = vsyncpa [#allocation3], 0
    %13 = vsyncpa [#allocation6], 0
    %14 = vsyncpa [#allocation4], 0
    // Predicated region
    $region2: #{tpu_custom_call.1} parent=1 // pred_check
      _
    $region3: #{tpu_custom_call.1} parent=1 // pred_check_branch
      %16 = sbr.rel (0) target = $region5
    $region4: #{tpu_custom_call.1} parent=1 // pred_region
      %s18 = ssub.s32 256, 256
      %19 = vsyncadd [#allocation3], %s18
      %s20 = sshll.u32 [#allocation2], 4
      %s21 = int_to_ptr.vmem [resolvable:$true] %s20
      %26 = dma.hbm_to_vmem [thread:$0]  %s0, 256, %s21, [#allocation3], 128, 128, 8
    $region5: #{tpu_custom_call.1} parent=1 // pred_fallthru
      _
    // Predicated region
    $region6: #{tpu_custom_call.1} parent=1 // pred_check
      _
    $region7: #{tpu_custom_call.1} parent=1 // pred_check_branch
      %28 = sbr.rel (0) target = $region9
    $region8: #{tpu_custom_call.1} parent=1 // pred_region
      %s30 = ssub.s32 1024, 1024
      %31 = vsyncadd [#allocation6], %s30
      %s32 = sshll.u32 [#allocation5], 4
      %s33 = int_to_ptr.vmem [resolvable:$true] %s32
      %38 = dma.hbm_to_vmem [thread:$0]  %s1, 1024, %s33, [#allocation6], 64, 64, 4
    $region9: #{tpu_custom_call.1} parent=1 // pred_fallthru
      _
    // Predicated region
    $region10: #{tpu_custom_call.1} parent=1 // pred_check
      _
    $region11: #{tpu_custom_call.1} parent=1 // pred_check_branch
      %40 = sbr.rel (0) target = $region13
    $region12: #{tpu_custom_call.1} parent=1 // pred_region
      _
    $region13: #{tpu_custom_call.1} parent=1 // pred_fallthru
      _
    // Predicated region
    $region14: #{tpu_custom_call.1} parent=1 // pred_check
      _
    $region15: #{tpu_custom_call.1} parent=1 // pred_check_branch
      %42 = sbr.rel (0) target = $region17
    $region16: #{tpu_custom_call.1} parent=1 // pred_region
      %s44 = ssub.s32 1024, 1024
      %45 = vsyncadd [#allocation6], %s44
      %s46 = sshll.u32 [#allocation7], 4
      %s47 = int_to_ptr.vmem [resolvable:$true] %s46
      %52 = dma.hbm_to_vmem [thread:$0]  %s3, 1024, %s47, [#allocation6], 64, 64, 4
    $region17: #{tpu_custom_call.1} parent=1 // pred_fallthru
      _
    // Predicated region
    $region18: #{tpu_custom_call.1} parent=1 // pred_check
      _
    $region19: #{tpu_custom_call.1} parent=1 // pred_check_branch
      %54 = sbr.rel (0) target = $region21
    $region20: #{tpu_custom_call.1} parent=1 // pred_region
      _
    $region21: #{tpu_custom_call.1} parent=1 // pred_fallthru
      _
    // Predicated region
    $region22: #{tpu_custom_call.1} parent=1 // pred_check
      _
    $region23: #{tpu_custom_call.1} parent=1 // pred_check_branch
      %56 = sbr.rel (0) target = $region25
    $region24: #{tpu_custom_call.1} parent=1 // pred_region
      _
    $region25: #{tpu_custom_call.1} parent=1 // pred_fallthru
      _
    // Predicated region
    $region26: #{tpu_custom_call.1} parent=1 // pred_check
      _
    $region27: #{tpu_custom_call.1} parent=1 // pred_check_branch
      %58 = sbr.rel (0) target = $region29
    $region28: #{tpu_custom_call.1} parent=1 // pred_region
      _
    $region29: #{tpu_custom_call.1} parent=1 // pred_fallthru
      _
    // Predicated region
    $region30: #{tpu_custom_call.1} parent=1 // pred_check
      _
    $region31: #{tpu_custom_call.1} parent=1 // pred_check_branch
      %60 = sbr.rel (0) target = $region33
    $region32: #{tpu_custom_call.1} parent=1 // pred_region
      %61 = dma.done [#allocation3], 256
    $region33: #{tpu_custom_call.1} parent=1 // pred_fallthru
      _
    // Predicated region
    $region34: #{tpu_custom_call.1} parent=1 // pred_check
      _
    $region35: #{tpu_custom_call.1} parent=1 // pred_check_branch
      %63 = sbr.rel (0) target = $region37
    $region36: #{tpu_custom_call.1} parent=1 // pred_region
      %64 = dma.done [#allocation6], 1024
    $region37: #{tpu_custom_call.1} parent=1 // pred_fallthru
      _
    // Predicated region
    $region38: #{tpu_custom_call.1} parent=1 // pred_check
      _
    $region39: #{tpu_custom_call.1} parent=1 // pred_check_branch
      %66 = sbr.rel (0) target = $region41
    $region40: #{tpu_custom_call.1} parent=1 // pred_region
      %67 = dma.done [#allocation6], 1024
    $region41: #{tpu_custom_call.1} parent=1 // pred_fallthru
      _
    %v69 = vld [vmem:[#allocation2] sm:$0xff]
    %v70 = vld [vmem:[#allocation2 + $0x8] sm:$0xff]
    %v71 = vpack.c.bf16 %v70, %v69
    %v72 = vld [vmem:[#allocation5] sm:$0xf]
    %v73 = vld [vmem:[#allocation5 + $0x4] sm:$0xf]
    %v74 = vld [vmem:[#allocation5 + $0x8] sm:$0xf]
    %v75 = vld [vmem:[#allocation5 + $0xc] sm:$0xf]
    %v76 = vld [vmem:[#allocation5 + $0x10] sm:$0xf]
    %v77 = vld [vmem:[#allocation5 + $0x14] sm:$0xf]
    %v78 = vld [vmem:[#allocation5 + $0x18] sm:$0xf]
    %v79 = vld [vmem:[#allocation5 + $0x1c] sm:$0xf]
    %v80 = vld [vmem:[#allocation5 + $0x20] sm:$0xf]
    %v81 = vld [vmem:[#allocation5 + $0x24] sm:$0xf]
    %v82 = vld [vmem:[#allocation5 + $0x28] sm:$0xf]
    %v83 = vld [vmem:[#allocation5 + $0x2c] sm:$0xf]
    %v84 = vld [vmem:[#allocation5 + $0x30] sm:$0xf]
    %v85 = vld [vmem:[#allocation5 + $0x34] sm:$0xf]
    %v86 = vld [vmem:[#allocation5 + $0x38] sm:$0xf]
    %v87 = vld [vmem:[#allocation5 + $0x3c] sm:$0xf]
    %v88 = vld [vmem:[%s2] sm:$0x1]
    %v90 = vlaneseq
    %v91 = vshrl.u32 %v90, 7
    %v92 = vsub.s32 0, %v91
    %v93 = vrot.slane %v88, %v92
    %v111 = vunpack.c.l.b16 %v72
    %v112 = vunpack.c.l.b16 %v73
    %v113 = vunpack.c.l.b16 %v74
    %v114 = vunpack.c.l.b16 %v75
    %v115 = vunpack.c.l.b16 %v76
    %v116 = vunpack.c.l.b16 %v77
    %v117 = vunpack.c.l.b16 %v78
    %v118 = vunpack.c.l.b16 %v79
    %v119 = vunpack.c.l.b16 %v80
    %v120 = vunpack.c.l.b16 %v81
    %v121 = vunpack.c.l.b16 %v82
    %v122 = vunpack.c.l.b16 %v83
    %v123 = vunpack.c.l.b16 %v84
    %v124 = vunpack.c.l.b16 %v85
    %v125 = vunpack.c.l.b16 %v86
    %v126 = vunpack.c.l.b16 %v87
    %v127 = vpack.c.b16 %v112, %v111
    %v128 = vpack.c.b16 %v114, %v113
    %v129 = vpack.c.b16 %v116, %v115
    %v130 = vpack.c.b16 %v118, %v117
    %v131 = vpack.c.b16 %v120, %v119
    %v132 = vpack.c.b16 %v122, %v121
    %v133 = vpack.c.b16 %v124, %v123
    %v134 = vpack.c.b16 %v126, %v125
    %143 = vmatprep.subr.bf16.mxu0 0
    %144 = vmatpush1.bf16.msra.mxu0 %v127
    %145 = vmatprep.subr.bf16.mxu0 0
    %146 = vmatpush1.bf16.msra.mxu0 %v128
    %147 = vmatprep.subr.bf16.mxu0 0
    %148 = vmatpush1.bf16.msra.mxu0 %v129
    %149 = vmatprep.subr.bf16.mxu0 0
    %150 = vmatpush1.bf16.msra.mxu0 %v130
    %151 = vmatprep.subr.bf16.mxu0 0
    %152 = vmatpush1.bf16.msra.mxu0 %v131
    %153 = vmatprep.subr.bf16.mxu0 0
    %154 = vmatpush1.bf16.msra.mxu0 %v132
    %155 = vmatprep.subr.bf16.mxu0 0
    %156 = vmatpush1.bf16.msra.mxu0 %v133
    %157 = vmatprep.subr.bf16.mxu0 0
    %158 = vmatpush1.bf16.msra.mxu0 %v134
    %159 = vmatprep.subr.bf16.mxu0 0
    %160 = vmatpush1.bf16.msra.mxu0 0
    %161 = vmatprep.subr.bf16.mxu0 0
    %162 = vmatpush1.bf16.msra.mxu0 0
    %163 = vmatprep.subr.bf16.mxu0 0
    %164 = vmatpush1.bf16.msra.mxu0 0
    %165 = vmatprep.subr.bf16.mxu0 0
    %166 = vmatpush1.bf16.msra.mxu0 0
    %167 = vmatprep.subr.bf16.mxu0 0
    %168 = vmatpush1.bf16.msra.mxu0 0
    %169 = vmatprep.subr.bf16.mxu0 0
    %170 = vmatpush1.bf16.msra.mxu0 0
    %171 = vmatprep.subr.bf16.mxu0 0
    %172 = vmatpush1.bf16.msra.mxu0 0
    %173 = vmatprep.subr.bf16.mxu0 0
    %174 = vmatpush1.bf16.msra.mxu0 0
    %175 = vmatprep.mubr.bf16.mxu0 0
    %176 = vmatmul.mubr.bf16.gmra.mrb[0].mxu0 %v71
    %v177 = vpop.f32.mrb[0].mxu0
    %v178 = vadd.f32 %v93, %v177
    %v179 = vpop.f32.mrb[0].mxu0
    %v180 = vpop.f32.mrb[0].mxu0
    %v181 = vadd.f32 %v93, %v180
    %v182 = vpop.f32.mrb[0].mxu0
    %183 = vdwg.mxu0
    %v184 = vmax.f32 %v178, 0.0
    %v185 = vmax.f32 %v181, 0.0
    %v186 = vpack.c.bf16 %v185, %v184
    %v187 = vld [vmem:[#allocation7] sm:$0xf]
    %v188 = vld [vmem:[#allocation7 + $0x4] sm:$0xf]
    %v189 = vld [vmem:[#allocation7 + $0x8] sm:$0xf]
    %v190 = vld [vmem:[#allocation7 + $0xc] sm:$0xf]
    %v191 = vld [vmem:[#allocation7 + $0x10] sm:$0xf]
    %v192 = vld [vmem:[#allocation7 + $0x14] sm:$0xf]
    %v193 = vld [vmem:[#allocation7 + $0x18] sm:$0xf]
    %v194 = vld [vmem:[#allocation7 + $0x1c] sm:$0xf]
    %v195 = vld [vmem:[#allocation7 + $0x20] sm:$0xf]
    %v196 = vld [vmem:[#allocation7 + $0x24] sm:$0xf]
    %v197 = vld [vmem:[#allocation7 + $0x28] sm:$0xf]
    %v198 = vld [vmem:[#allocation7 + $0x2c] sm:$0xf]
    %v199 = vld [vmem:[#allocation7 + $0x30] sm:$0xf]
    %v200 = vld [vmem:[#allocation7 + $0x34] sm:$0xf]
    %v201 = vld [vmem:[#allocation7 + $0x38] sm:$0xf]
    %v202 = vld [vmem:[#allocation7 + $0x3c] sm:$0xf]
    %v203 = vld [vmem:[%s4] sm:$0x1]
    %v205 = vlaneseq
    %v206 = vshrl.u32 %v205, 7
    %v207 = vsub.s32 0, %v206
    %v208 = vrot.slane %v203, %v207
    %v226 = vunpack.c.l.b16 %v187
    %v227 = vunpack.c.l.b16 %v188
    %v228 = vunpack.c.l.b16 %v189
    %v229 = vunpack.c.l.b16 %v190
    %v230 = vunpack.c.l.b16 %v191
    %v231 = vunpack.c.l.b16 %v192
    %v232 = vunpack.c.l.b16 %v193
    %v233 = vunpack.c.l.b16 %v194
    %v234 = vunpack.c.l.b16 %v195
    %v235 = vunpack.c.l.b16 %v196
    %v236 = vunpack.c.l.b16 %v197
    %v237 = vunpack.c.l.b16 %v198
    %v238 = vunpack.c.l.b16 %v199
    %v239 = vunpack.c.l.b16 %v200
    %v240 = vunpack.c.l.b16 %v201
    %v241 = vunpack.c.l.b16 %v202
    %v242 = vpack.c.b16 %v227, %v226
    %v243 = vpack.c.b16 %v229, %v228
    %v244 = vpack.c.b16 %v231, %v230
    %v245 = vpack.c.b16 %v233, %v232
    %v246 = vpack.c.b16 %v235, %v234
    %v247 = vpack.c.b16 %v237, %v236
    %v248 = vpack.c.b16 %v239, %v238
    %v249 = vpack.c.b16 %v241, %v240
    %258 = vmatprep.subr.bf16.mxu0 0
    %259 = vmatpush1.bf16.msra.mxu0 %v242
    %260 = vmatprep.subr.bf16.mxu0 0
    %261 = vmatpush1.bf16.msra.mxu0 %v243
    %262 = vmatprep.subr.bf16.mxu0 0
    %263 = vmatpush1.bf16.msra.mxu0 %v244
    %264 = vmatprep.subr.bf16.mxu0 0
    %265 = vmatpush1.bf16.msra.mxu0 %v245
    %266 = vmatprep.subr.bf16.mxu0 0
    %267 = vmatpush1.bf16.msra.mxu0 %v246
    %268 = vmatprep.subr.bf16.mxu0 0
    %269 = vmatpush1.bf16.msra.mxu0 %v247
    %270 = vmatprep.subr.bf16.mxu0 0
    %271 = vmatpush1.bf16.msra.mxu0 %v248
    %272 = vmatprep.subr.bf16.mxu0 0
    %273 = vmatpush1.bf16.msra.mxu0 %v249
    %274 = vmatprep.subr.bf16.mxu0 0
    %275 = vmatpush1.bf16.msra.mxu0 0
    %276 = vmatprep.subr.bf16.mxu0 0
    %277 = vmatpush1.bf16.msra.mxu0 0
    %278 = vmatprep.subr.bf16.mxu0 0
    %279 = vmatpush1.bf16.msra.mxu0 0
    %280 = vmatprep.subr.bf16.mxu0 0
    %281 = vmatpush1.bf16.msra.mxu0 0
    %282 = vmatprep.subr.bf16.mxu0 0
    %283 = vmatpush1.bf16.msra.mxu0 0
    %284 = vmatprep.subr.bf16.mxu0 0
    %285 = vmatpush1.bf16.msra.mxu0 0
    %286 = vmatprep.subr.bf16.mxu0 0
    %287 = vmatpush1.bf16.msra.mxu0 0
    %288 = vmatprep.subr.bf16.mxu0 0
    %289 = vmatpush1.bf16.msra.mxu0 0
    %290 = vmatprep.mubr.bf16.mxu0 0
    %291 = vmatmul.mubr.bf16.gmra.mrb[0].mxu0 %v186
    %v292 = vpop.f32.mrb[0].mxu0
    %v293 = vadd.f32 %v208, %v292
    %v294 = vpop.f32.mrb[0].mxu0
    %v295 = vpop.f32.mrb[0].mxu0
    %v296 = vadd.f32 %v208, %v295
    %v297 = vpop.f32.mrb[0].mxu0
    %298 = vdwg.mxu0
    %v299 = vadd.f32 %v293, %v69
    %v300 = vadd.f32 %v296, %v70
    %v301 = vld [vmem:[%s5] sm:$0x1]
    %v302 = vld [vmem:[%s6] sm:$0x1]
    %303 = vadd.xlane.f32.xlu0 %v299
    %v304 = vpop.xlane.xlu0 %303
    %305 = vadd.xlane.f32.xlu0 %v300
    %v306 = vpop.xlane.xlu0 %305
    %v307 = vmul.f32 %v304, 0.03125
    %v308 = vmul.f32 %v306, 0.03125
    %v309 = vmul.f32 %v299, %v299
    %v310 = vmul.f32 %v300, %v300
    %311 = vadd.xlane.f32.xlu0 %v309
    %v312 = vpop.xlane.xlu0 %311
    %313 = vadd.xlane.f32.xlu0 %v310
    %v314 = vpop.xlane.xlu0 %313
    %v315 = vmul.f32 %v312, 0.03125
    %v316 = vmul.f32 %v314, 0.03125
    %v317 = vmul.f32 %v307, %v307
    %v318 = vmul.f32 %v308, %v308
    %v319 = vsub.f32 %v315, %v317
    %v320 = vsub.f32 %v316, %v318
    %v321 = vmax.f32 %v319, 0.0
    %v322 = vmax.f32 %v320, 0.0
    %v323 = vsub.f32 %v299, %v307
    %v324 = vsub.f32 %v300, %v308
    %v325 = vadd.f32 %v321, 1e-06
    %v326 = vadd.f32 %v322, 1e-06
    %v327 = vrsqrt.pop %v325
    %v328 = vrsqrt.pop %v326
    %v329 = vmul.f32 %v323, %v327
    %v330 = vmul.f32 %v324, %v328
    %v332 = vlaneseq
    %v333 = vshrl.u32 %v332, 7
    %v334 = vsub.s32 0, %v333
    %v335 = vrot.slane %v301, %v334
    %v337 = vmul.f32 %v329, %v335
    %v338 = vmul.f32 %v330, %v335
    %v340 = vlaneseq
    %v341 = vshrl.u32 %v340, 7
    %v342 = vsub.s32 0, %v341
    %v343 = vrot.slane %v302, %v342
    %v345 = vadd.f32 %v337, %v343
    %v346 = vadd.f32 %v338, %v343
    %347 = vst [vmem:[#allocation8] sm:$0xff] %v345
    %348 = vst [vmem:[#allocation8 + $0x8] sm:$0xff] %v346
    // Predicated region
    $region42: #{tpu_custom_call.1} parent=1 // pred_check
      _
    $region43: #{tpu_custom_call.1} parent=1 // pred_check_branch
      %350 = sbr.rel (0) target = $region45
    $region44: #{tpu_custom_call.1} parent=1 // pred_region
      %s352 = ssub.s32 256, 256
      %353 = vsyncadd [#allocation4], %s352
      %s354 = sshll.u32 [#allocation8], 4
      %s355 = int_to_ptr.vmem [resolvable:$true] %s354
      %360 = dma.vmem_to_hbm [thread:$0]  %s355, 256, %s7, [#allocation4], 128, 128, 8
    $region45: #{tpu_custom_call.1} parent=1 // pred_fallthru
      _
    // Predicated region
    $region46: #{tpu_custom_call.1} parent=1 // pred_check
      _
    $region47: #{tpu_custom_call.1} parent=1 // pred_check_branch
      %362 = sbr.rel (0) target = $region49
    $region48: #{tpu_custom_call.1} parent=1 // pred_region
      %363 = dma.done [#allocation4], 256
    $region49: #{tpu_custom_call.1} parent=1 // pred_fallthru
      _
    %364 = vsyncpa [#allocation3], 1
    %365 = vsyncpa [#allocation6], 1
    %366 = vsyncpa [#allocation4], 1

</llo_original>
